<compile_context>
chip_gen: v6e
topology: v6e:2x2x1
jax: 0.10.0
libtpu: 0.0.40
codegen_flags: <defaults>
</compile_context>

<pallas_src>
import jax
import jax.numpy as jnp
from jax import lax
from jax.experimental import pallas as pl
from jax.experimental.pallas import tpu as pltpu

LANES = 128
SUBLANES = 8
DEFAULT_BLOCK_BYTES = 4 * 1024 * 1024   # per input, per pipeline buffer
VMEM_LIMIT_FLOOR = 32 * 1024 * 1024     # safe on v5e/v6e (128 MiB) and v7x (64 MiB)
NUM_SLICES = 2                          # 2 TensorCores on v7x; sequential elsewhere


def _choose_row_width(shape, itemsize, total_n, max_block_bytes):
    """Pick a zero-copy 2-D row width, or None to use the (rare) pad fallback."""
    if total_n % LANES == 0:
        return LANES
    best = None
    prod = 1
    for d in reversed(shape):
        prod *= int(d)
        if prod < LANES:
            continue
        lanes_padded = -(-prod // LANES) * LANES
        # Require that at least an 8-row block of this width fits the budget.
        if SUBLANES * lanes_padded * itemsize <= max_block_bytes:
            best = prod
    return best


def _make_sse_kernel(total_rows, block_rows, row_width, steps, needs_mask, acc_rows):
    """Builds a kernel producing one (acc_rows, row_width) partial-SSE slab per slice."""
    vector_acc = (acc_rows == SUBLANES)  # implies block_rows % 8 == 0

    def accumulate(acc_ref, vals):
        if vector_acc:
            # Pure VALU adds: reduce groups of 8 rows onto the (8, W) accumulator.
            acc_ref[...] += jnp.sum(
                vals.reshape(block_rows // SUBLANES, SUBLANES, row_width), axis=0)
        else:
            acc_ref[...] += jnp.sum(vals, axis=0, keepdims=True)

    def kernel(yhat_ref, y_ref, out_ref, acc_ref):
        j = pl.program_id(1)

        @pl.when(j == 0)
        def _():
            acc_ref[...] = jnp.zeros_like(acc_ref)

        # Upcast inside the kernel: inputs stream through HBM in native dtype.
        d = yhat_ref[...].astype(jnp.float32) - y_ref[...].astype(jnp.float32)
        dd = d * d

        if needs_mask:
            i = pl.program_id(0)
            valid_rows = total_rows - (i * steps + j) * block_rows

            # Fast path: full block, no mask work at all.
            @pl.when(valid_rows >= block_rows)
            def _():
                accumulate(acc_ref, dd)

            # Cold path: ragged final block or clamped overhang block
            # (valid_rows <= 0 masks everything).
            @pl.when(valid_rows < block_rows)
            def _():
                row_ids = lax.broadcasted_iota(jnp.int32, (block_rows, 1), 0)
                accumulate(acc_ref, jnp.where(row_ids < valid_rows, dd, 0.0))
        else:
            accumulate(acc_ref, dd)

        @pl.when(j == pl.num_programs(1) - 1)
        def _():
            out_ref[...] = acc_ref[...]

    return kernel


def rmse_loss(yhat: jax.Array, y: jax.Array, eps: float = 1e-6,
              *, max_block_bytes: int = DEFAULT_BLOCK_BYTES) -> jax.Array:
    """Pallas implementation of RMSELoss.forward: sqrt(mean((yhat-y)^2) + eps)."""
    assert yhat.shape == y.shape, "yhat and y must have identical shapes"
    total_n = int(yhat.size)
    assert total_n > 0, "RMSELoss needs at least one element"

    itemsize = max(jnp.dtype(yhat.dtype).itemsize, jnp.dtype(y.dtype).itemsize)
    row_width = _choose_row_width(yhat.shape, itemsize, total_n, max_block_bytes)

    if row_width is None:
        # Rare fallback (e.g. huge 1-D array with N % 128 != 0 and no usable
        # trailing-dim factor): zero-pad the flat vector to a multiple of 128.
        # Padded entries are zero in BOTH inputs -> contribute nothing to SSE.
        # TODO(synk): a manual-DMA (pl.ANY) path could avoid this copy too.
        row_width = LANES
        pad = (-total_n) % LANES
        yhat2d = jnp.pad(yhat.reshape(-1), (0, pad)).reshape(-1, LANES)
        y2d = jnp.pad(y.reshape(-1), (0, pad)).reshape(-1, LANES)
    else:
        # Zero-copy view: reshape of a contiguous array is free.
        yhat2d = yhat.reshape(-1, row_width)
        y2d = y.reshape(-1, row_width)

    rows = yhat2d.shape[0]

    # Byte-targeted, dtype-aware block sizing (lane-padded width for VMEM budget).
    lanes_padded = -(-row_width // LANES) * LANES
    bytes_per_row = lanes_padded * itemsize
    max_rows = max(SUBLANES, (max_block_bytes // bytes_per_row) // SUBLANES * SUBLANES)
    block_rows = rows if rows <= max_rows else max_rows

    row_blocks = -(-rows // block_rows)
    num_slices = NUM_SLICES if row_blocks >= NUM_SLICES else 1
    steps = -(-row_blocks // num_slices)
    needs_mask = (num_slices * steps * block_rows) != rows
    acc_rows = SUBLANES if block_rows % SUBLANES == 0 else 1

    kernel = _make_sse_kernel(rows, block_rows, row_width, steps, needs_mask, acc_rows)

    if num_slices * steps == row_blocks:
        def in_map(i, j):
            return (i * steps + j, 0)
    else:
        def in_map(i, j):
            # Clamp the last slice's overhanging block; its contribution is
            # masked to zero inside the kernel (valid_rows <= 0).
            return (jnp.minimum(i * steps + j, row_blocks - 1), 0)

    block_bytes = block_rows * bytes_per_row
    vmem_limit = max(VMEM_LIMIT_FLOOR, 4 * block_bytes + (4 << 20))

    partial_sse = pl.pallas_call(
        kernel,
        out_shape=jax.ShapeDtypeStruct((num_slices * acc_rows, row_width), jnp.float32),
        grid_spec=pltpu.PrefetchScalarGridSpec(
            num_scalar_prefetch=0,
            grid=(num_slices, steps),
            in_specs=[
                pl.BlockSpec((block_rows, row_width), in_map),
                pl.BlockSpec((block_rows, row_width), in_map),
            ],
            out_specs=pl.BlockSpec((acc_rows, row_width), lambda i, j: (i, 0)),
            scratch_shapes=[pltpu.VMEM((acc_rows, row_width), jnp.float32)],
        ),
        compiler_params=pltpu.CompilerParams(
            dimension_semantics=("parallel", "arbitrary"),
            vmem_limit_bytes=int(vmem_limit),
        ),
    )(yhat2d, y2d)

    sse = jnp.sum(partial_sse)
    return jnp.sqrt(sse / jnp.float32(total_n) + jnp.float32(eps))


if __name__ == "__main__":
    key = jax.random.PRNGKey(0)
    k1, k2, k3, k4 = jax.random.split(key, 4)
    eps = 1e-6

    def ref_loss(a, b):
        d = a.astype(jnp.float32) - b.astype(jnp.float32)
        return jnp.sqrt(jnp.mean(d * d) + eps)

    # Primary example: small NCHW inputs (2, 4, 16, 16), as typically fed here.
    shape = (2, 4, 16, 16)
    yhat = jax.random.normal(k1, shape, dtype=jnp.float32)
    y = jax.random.normal(k2, shape, dtype=jnp.float32)
    loss = jax.block_until_ready(rmse_loss(yhat, y, eps=eps))
    assert jnp.allclose(loss, ref_loss(yhat, y), rtol=1e-5, atol=1e-6), (loss, ref_loss(yhat, y))

    # Extra paths, kept small:
    #  (a) non-128-multiple element count -> zero-copy trailing-dim view (row_width=1155)
    #  (b) bf16 inputs -> in-kernel upcast, dtype-aware block sizing
    #  (c) small max_block_bytes -> multi-block, 2-slice grid, ragged-block mask
    #  (d) odd number of row blocks -> clamped overhang block fully masked
    #  (e) non-128 row width + multi-block vector accumulator path
    cases = [
        ((3, 5, 7, 11), jnp.float32, DEFAULT_BLOCK_BYTES),
        ((2, 4, 16, 16), jnp.bfloat16, DEFAULT_BLOCK_BYTES),
        ((1, 1, 2600, 128), jnp.float32, 256 * 1024),
        ((1, 1, 1300, 128), jnp.float32, 256 * 1024),
        ((100, 385), jnp.float32, 64 * 1024),
    ]
    for extra_shape, dt, mbb in cases:
        ya = jax.random.normal(k3, extra_shape, dtype=jnp.float32).astype(dt)
        yb = jax.random.normal(k4, extra_shape, dtype=jnp.float32).astype(dt)
        l = jax.block_until_ready(rmse_loss(ya, yb, eps=eps, max_block_bytes=mbb))
        r = ref_loss(ya, yb)
        assert jnp.allclose(l, r, rtol=1e-5, atol=1e-6), (extra_shape, dt, l, r)

    print("KERNEL_OK")
</pallas_src>

<mosaic_0001>
module attributes {stable_mosaic.version = 11 : i64} {
  func.func @kernel(%arg0: i32, %arg1: i32, %arg2: memref<16x128xf32, #tpu.memory_space<vmem>>, %arg3: memref<16x128xf32, #tpu.memory_space<vmem>>, %arg4: memref<8x128xf32, #tpu.memory_space<vmem>>, %arg5: memref<8x128xf32, #tpu.memory_space<vmem>>) attributes {dimension_semantics = [#tpu.dimension_semantics<parallel>, #tpu.dimension_semantics<arbitrary>], iteration_bounds = array<i64: 1, 1>, scalar_prefetch = 0 : i64, scratch_operands = 1 : i64, tpu.core_type = #tpu.core_type<tc>, window_params = [{transform_indices = @transform_0, window_bounds = array<i64: 16, 128>}, {transform_indices = @transform_1, window_bounds = array<i64: 16, 128>}, {transform_indices = @transform_2, window_bounds = array<i64: 8, 128>}]} {
    %c0_i32 = arith.constant 0 : i32
    %0 = arith.cmpi eq, %arg1, %c0_i32 : i32
    %1 = arith.extui %0 : i1 to i32
    %c0_i32_0 = arith.constant 0 : i32
    %2 = arith.cmpi ne, %1, %c0_i32_0 : i32
    scf.if %2 {
      %cst_10 = arith.constant 0.000000e+00 : f32
      %15 = vector.broadcast %cst_10 : f32 to vector<8x128xf32>
      %c0_11 = arith.constant 0 : index
      %c0_12 = arith.constant 0 : index
      %16 = vector.load %arg5[%c0_11, %c0_12] : memref<8x128xf32, #tpu.memory_space<vmem>>, vector<8x128xf32>
      tpu.vector_store %arg5[%c0_11, %c0_12], %15 {strides = array<i32>} : memref<8x128xf32, #tpu.memory_space<vmem>>, vector<8x128xf32>,
    } else {
    }
    %c0 = arith.constant 0 : index
    %c0_1 = arith.constant 0 : index
    %3 = vector.load %arg2[%c0, %c0_1] : memref<16x128xf32, #tpu.memory_space<vmem>>, vector<16x128xf32>
    %c0_2 = arith.constant 0 : index
    %c0_3 = arith.constant 0 : index
    %4 = vector.load %arg3[%c0_2, %c0_3] : memref<16x128xf32, #tpu.memory_space<vmem>>, vector<16x128xf32>
    %5 = arith.subf %3, %4 : vector<16x128xf32>
    %6 = arith.mulf %5, %5 : vector<16x128xf32>
    %c0_4 = arith.constant 0 : index
    %c0_5 = arith.constant 0 : index
    %7 = vector.load %arg5[%c0_4, %c0_5] : memref<8x128xf32, #tpu.memory_space<vmem>>, vector<8x128xf32>
    %8 = vector.shape_cast %6 : vector<16x128xf32> to vector<2x8x128xf32>
    %cst = arith.constant dense<0.000000e+00> : vector<8x128xf32>
    %9 = vector.multi_reduction <add>, %8, %cst [0] : vector<2x8x128xf32> to vector<8x128xf32>
    %10 = arith.addf %7, %9 : vector<8x128xf32>
    %c0_6 = arith.constant 0 : index
    %c0_7 = arith.constant 0 : index
    %11 = vector.load %arg5[%c0_6, %c0_7] : memref<8x128xf32, #tpu.memory_space<vmem>>, vector<8x128xf32>
    tpu.vector_store %arg5[%c0_6, %c0_7], %10 {strides = array<i32>} : memref<8x128xf32, #tpu.memory_space<vmem>>, vector<8x128xf32>,
    %c0_i32_8 = arith.constant 0 : i32
    %12 = arith.cmpi eq, %arg1, %c0_i32_8 : i32
    %13 = arith.extui %12 : i1 to i32
    %c0_i32_9 = arith.constant 0 : i32
    %14 = arith.cmpi ne, %13, %c0_i32_9 : i32
    scf.if %14 {
      %c0_10 = arith.constant 0 : index
      %c0_11 = arith.constant 0 : index
      %15 = vector.load %arg5[%c0_10, %c0_11] : memref<8x128xf32, #tpu.memory_space<vmem>>, vector<8x128xf32>
      %c0_12 = arith.constant 0 : index
      %c0_13 = arith.constant 0 : index
      %16 = vector.load %arg4[%c0_12, %c0_13] : memref<8x128xf32, #tpu.memory_space<vmem>>, vector<8x128xf32>
      tpu.vector_store %arg4[%c0_12, %c0_13], %15 {strides = array<i32>} : memref<8x128xf32, #tpu.memory_space<vmem>>, vector<8x128xf32>,
    } else {
    }
    return
  }
  func.func @transform_0(%arg0: i32, %arg1: i32) -> (i32, i32) {
    %c1_i32 = arith.constant 1 : i32
    %0 = arith.muli %arg0, %c1_i32 : i32
    %1 = arith.addi %0, %arg1 : i32
    %c0_i32 = arith.constant 0 : i32
    %c0_i32_0 = arith.constant 0 : i32
    return %1, %c0_i32 : i32, i32
  }
  func.func @transform_1(%arg0: i32, %arg1: i32) -> (i32, i32) {
    %c1_i32 = arith.constant 1 : i32
    %0 = arith.muli %arg0, %c1_i32 : i32
    %1 = arith.addi %0, %arg1 : i32
    %c0_i32 = arith.constant 0 : i32
    %c0_i32_0 = arith.constant 0 : i32
    return %1, %c0_i32 : i32, i32
  }
  func.func @transform_2(%arg0: i32, %arg1: i32) -> (i32, i32) {
    %c0_i32 = arith.constant 0 : i32
    %c0_i32_0 = arith.constant 0 : i32
    return %arg0, %c0_i32 : i32, i32
  }
}

</mosaic_0001>

<llo_original>
// kernel: tpu_custom_call.1
$region0: #{tpu_custom_call.1}
  #allocation0 [shape = 'u32[]', space=smem, size = 0x4, offset = 0x4, fixed_abs, tag = 'smem constant byte address 0x4 - core index']
  #allocation1 [shape = 'u32[144,128]{1,0:T(1,128)}', space=vmem, size = 0x12000, scoped, tag = 'internal scratch']
  #allocation2 [shape = 'f32[8,128]{1,0:T(8,128)}', space=vmem, size = 0x1000, scoped, tag = 'scratch operand']
  %s0 = inlined_call_operand.hbm [shape: f32[16,128], index: 0, kind: input, shape index: {}]
  %s1 = inlined_call_operand.hbm [shape: f32[16,128], index: 1, kind: input, shape index: {}]
  %s2 = inlined_call_operand.hbm [shape: f32[8,128], index: 2, kind: output, shape index: {}]
  %s3 = sld [smem:[#allocation0]]
  $region34: #{tpu_custom_call.1} parent=0
    _
  %s5 = ssub.s32 1, %s3
  %s6 = scalar_select 0, %s5, %s3
  $region1: #{tpu_custom_call.1} parent=0
    #allocation3 [shape = 'u8[8192]{0}', space=vmem, size = 0x2000, scoped, tag = 'input window, operand 0, single buffered']
    #allocation4 [shape = 's32[1]{0}', space=sflag, size = 0x4, scoped, tag = 'scoped memory for tpu_custom_call.1']
    #allocation5 [shape = 's32[1]{0}', space=sflag, size = 0x4, scoped, tag = 'scoped memory for tpu_custom_call.1']
    #allocation6 [shape = 'u8[8192]{0}', space=vmem, size = 0x2000, scoped, tag = 'input window, operand 1, single buffered']
    #allocation7 [shape = 's32[1]{0}', space=sflag, size = 0x4, scoped, tag = 'scoped memory for tpu_custom_call.1']
    #allocation8 [shape = 'u8[4096]{0}', space=vmem, size = 0x1000, scoped, tag = 'output window, operand 0, single buffered']
    %7 = vsyncpa [#allocation4], 0
    %8 = vsyncpa [#allocation7], 0
    %9 = vsyncpa [#allocation5], 0
    // Predicated region
    $region2: #{tpu_custom_call.1} parent=1 // pred_check
      _
    $region3: #{tpu_custom_call.1} parent=1 // pred_check_branch
      %11 = sbr.rel (0) target = $region5
    $region4: #{tpu_custom_call.1} parent=1 // pred_region
      %s12 = sadd.s32 0, 0
      %s13 = smul.u32 2, %s12
      %s15 = ssub.s32 256, 256
      %16 = vsyncadd [#allocation4], %s15
      %s17 = smul.addr %s13, 128
      %s18 = scalar_lea.hbm %s0, %s17
      %s19 = sshll.u32 [#allocation3], 4
      %s20 = int_to_ptr.vmem [resolvable:$true] %s19
      %25 = dma.hbm_to_vmem [thread:$0]  %s18, 256, %s20, [#allocation4], 128, 128, 8
    $region5: #{tpu_custom_call.1} parent=1 // pred_fallthru
      _
    // Predicated region
    $region6: #{tpu_custom_call.1} parent=1 // pred_check
      _
    $region7: #{tpu_custom_call.1} parent=1 // pred_check_branch
      %27 = sbr.rel (0) target = $region9
    $region8: #{tpu_custom_call.1} parent=1 // pred_region
      %s28 = sadd.s32 0, 0
      %s29 = smul.u32 2, %s28
      %s31 = ssub.s32 256, 256
      %32 = vsyncadd [#allocation7], %s31
      %s33 = smul.addr %s29, 128
      %s34 = scalar_lea.hbm %s1, %s33
      %s35 = sshll.u32 [#allocation6], 4
      %s36 = int_to_ptr.vmem [resolvable:$true] %s35
      %41 = dma.hbm_to_vmem [thread:$0]  %s34, 256, %s36, [#allocation7], 128, 128, 8
    $region9: #{tpu_custom_call.1} parent=1 // pred_fallthru
      _
    // Predicated region
    $region10: #{tpu_custom_call.1} parent=1 // pred_check
      _
    $region11: #{tpu_custom_call.1} parent=1 // pred_check_branch
      %43 = sbr.rel (0) target = $region13
    $region12: #{tpu_custom_call.1} parent=1 // pred_region
      %44 = dma.done [#allocation4], 256
    $region13: #{tpu_custom_call.1} parent=1 // pred_fallthru
      _
    // Predicated region
    $region14: #{tpu_custom_call.1} parent=1 // pred_check
      _
    $region15: #{tpu_custom_call.1} parent=1 // pred_check_branch
      %46 = sbr.rel (0) target = $region17
    $region16: #{tpu_custom_call.1} parent=1 // pred_region
      %47 = dma.done [#allocation7], 256
    $region17: #{tpu_custom_call.1} parent=1 // pred_fallthru
      _
    %s48 = sadd.s32 0, 0
    %s49 = smul.u32 2, %s48
    %s50 = sadd.s32 0, 0
    %s51 = smul.u32 2, %s50
    %p52 = scmp.eq.s32.totalorder 0, 0
    // Predicated region
    $region18: #{tpu_custom_call.1} parent=1 // pred_check
      %p53 = pneg %p52
    $region19: #{tpu_custom_call.1} parent=1 // pred_check_branch
      %55 = sbr.rel (%p53) target = $region21
    $region20: #{tpu_custom_call.1} parent=1 // pred_region
      %56 = vst [vmem:[#allocation2] sm:$0xff] 0.0
    $region21: #{tpu_custom_call.1} parent=1 // pred_fallthru
      _
    %v57 = vld [vmem:[#allocation3] sm:$0xff]
    %v58 = vld [vmem:[#allocation3 + $0x8] sm:$0xff]
    %v59 = vld [vmem:[#allocation6] sm:$0xff]
    %v60 = vld [vmem:[#allocation6 + $0x8] sm:$0xff]
    %v61 = vsub.f32 %v57, %v59
    %v62 = vsub.f32 %v58, %v60
    %v63 = vmul.f32 %v61, %v61
    %v64 = vmul.f32 %v62, %v62
    %v65 = vld [vmem:[#allocation2] sm:$0xff]
    %v66 = vadd.f32 %v63, %v64
    %v67 = vadd.f32 %v65, %v66
    %68 = vst [vmem:[#allocation2] sm:$0xff] %v67
    // Predicated region
    $region22: #{tpu_custom_call.1} parent=1 // pred_check
      %p69 = pneg %p52
    $region23: #{tpu_custom_call.1} parent=1 // pred_check_branch
      %71 = sbr.rel (%p69) target = $region25
    $region24: #{tpu_custom_call.1} parent=1 // pred_region
      %v72 = vld [vmem:[#allocation2] sm:$0xff]
      %73 = vst [vmem:[#allocation8] sm:$0xff] %v72
    $region25: #{tpu_custom_call.1} parent=1 // pred_fallthru
      _
    // Predicated region
    $region26: #{tpu_custom_call.1} parent=1 // pred_check
      _
    $region27: #{tpu_custom_call.1} parent=1 // pred_check_branch
      %75 = sbr.rel (0) target = $region29
    $region28: #{tpu_custom_call.1} parent=1 // pred_region
      %s77 = ssub.s32 128, 128
      %78 = vsyncadd [#allocation5], %s77
      %s80 = sshll.u32 [#allocation8], 4
      %s81 = int_to_ptr.vmem [resolvable:$true] %s80
      %83 = dma.vmem_to_hbm [thread:$0]  %s81, 128, %s2, [#allocation5]
    $region29: #{tpu_custom_call.1} parent=1 // pred_fallthru
      _
    // Predicated region
    $region30: #{tpu_custom_call.1} parent=1 // pred_check
      _
    $region31: #{tpu_custom_call.1} parent=1 // pred_check_branch
      %85 = sbr.rel (0) target = $region33
    $region32: #{tpu_custom_call.1} parent=1 // pred_region
      %86 = dma.done [#allocation5], 128
    $region33: #{tpu_custom_call.1} parent=1 // pred_fallthru
      _
    %87 = vsyncpa [#allocation4], 1
    %88 = vsyncpa [#allocation7], 1
    %89 = vsyncpa [#allocation5], 1

</llo_original>
